<compile_context>
chip_gen: v5e
topology: v5e:2x2
jax: 0.10.0
libtpu: 0.0.40
codegen_flags: <defaults>
</compile_context>

<pallas_src>
import functools

import jax
import jax.numpy as jnp
from jax.experimental import pallas as pl
from jax.experimental.pallas import tpu as pltpu


def _round_up(n, m):
    return ((n + m - 1) // m) * m


def _mlp_kernel(x_ref, w1_ref, w2_ref, b2_ref, w3_ref, b3_ref, o_ref, *, chunk):
    """One batch tile of the 3-layer MLP, batch on the lane axis.

    x_ref : (8, TB)   rows 0..2 = x^T, row 3 = ones (bias lane), rows 4..7 = 0
    w1_ref: (64, 8)   cols 0..2 = W1, col 3 = b1, cols 4..7 = 0
    w2_ref: (64, 64)  b2_ref: (64, 1)
    w3_ref: (8, 64)   row 0 = W3, rows 1..7 = 0
    b3_ref: (1,)      scalar in SMEM
    o_ref : (1, TB)
    """
    tb = o_ref.shape[-1]
    n_chunks = tb // chunk

    # Hoist the tiny weights and the b2 lane-broadcast out of the chunk loop
    # (JAX does not CSE broadcast_in_dim; re-broadcasting per chunk would
    # multiply the VALU/XLU filler work by the chunk count).
    w1 = w1_ref[...]
    w2 = w2_ref[...]
    w3 = w3_ref[...]
    b2 = jnp.broadcast_to(b2_ref[...], (64, chunk))
    b3 = b3_ref[0]

    # Fully-unrolled chunk loop (static trip count): bounds each h1/h2 live
    # range to (64, chunk) (~16 vregs at chunk=256) instead of a (64, TB)
    # slab, and gives the scheduler a flat instruction stream.
    for c in range(n_chunks):
        j = c * chunk
        x = x_ref[:, pl.ds(j, chunk)]                                # (8, chunk)
        # Layer 1 on the MXU; the ones row of x folds the b1 add into the dot.
        h1 = jnp.dot(w1, x, preferred_element_type=jnp.float32)     # (64, chunk)
        h1 = jnp.maximum(h1, 0.0)
        # Layer 2: the well-shaped 64x64 matmul, f32 accumulation.
        h2 = jnp.dot(w2, h1, preferred_element_type=jnp.float32) + b2
        h2 = jnp.maximum(h2, 0.0)
        # Layer 3 on the MXU (M padded 1->8 with zero rows); keep row 0.
        y = jnp.dot(w3, h2, preferred_element_type=jnp.float32)[0:1, :] + b3
        o_ref[:, pl.ds(j, chunk)] = y.astype(o_ref.dtype)           # lane-dense


def _full(shape):
    n = len(shape)
    return pl.BlockSpec(shape, lambda i: (0,) * n)


@functools.partial(jax.jit, static_argnames=("tile_b",))
def forward_net(x, params, tile_b=4096):
    """ForwardNet.forward. x: (B, 3) float32 -> (B, 1) float32."""
    w1, b1, w2, b2, w3, b3 = params
    B, d_in = x.shape
    assert d_in == 3

    tile_b = max(256, _round_up(tile_b, 256))
    b128 = _round_up(B, 128)
    if b128 <= tile_b:
        # Small batch: a single grid step with the minimal 128-aligned tile
        # (a forced split only adds per-step overhead on 1-TC chips).
        tile_b = b128
        grid_b = 1
    else:
        # Large batch: an EVEN number of grid steps so the "parallel" batch
        # axis splits evenly across both v7x TensorCores (no-op on v5e/v6e).
        grid_b = pl.cdiv(B, tile_b)
        grid_b = 2 * pl.cdiv(grid_b, 2)
        tile_b = _round_up(pl.cdiv(B, grid_b), 256)

    # Inner-loop chunk: 256 lanes keeps h1/h2 at 16 vregs each.
    chunk = 256 if tile_b % 256 == 0 else 128
    Bp = grid_b * tile_b

    # Batch-on-lanes layout; K/M padding done once in the wrapper:
    #   x_aug: (8, Bp) = [x^T ; ones ; zeros]  (ones row folds b1 into layer 1)
    #   w1a  : (64, 8) = [W1 | b1 | zeros]
    #   w3p  : (8, 64) = [W3 ; zeros]
    x_t = x.T if Bp == B else jnp.pad(x.T, ((0, 0), (0, Bp - B)))
    x_aug = jnp.concatenate(
        [x_t, jnp.ones((1, Bp), x.dtype), jnp.zeros((4, Bp), x.dtype)], axis=0)
    w1a = jnp.pad(jnp.concatenate([w1, b1], axis=1), ((0, 0), (0, 4)))
    w3p = jnp.pad(w3, ((0, 7), (0, 0)))

    out = pl.pallas_call(
        functools.partial(_mlp_kernel, chunk=chunk),
        out_shape=jax.ShapeDtypeStruct((1, Bp), jnp.float32),
        grid_spec=pltpu.PrefetchScalarGridSpec(
            num_scalar_prefetch=0,
            grid=(grid_b,),
            in_specs=[
                pl.BlockSpec((8, tile_b), lambda i: (0, i)),          # x tile
                _full((64, 8)),                                       # [W1|b1]
                _full((64, 64)),                                      # W2
                _full((64, 1)),                                       # b2
                _full((8, 64)),                                       # W3 (padded)
                pl.BlockSpec(memory_space=pltpu.MemorySpace.SMEM),    # b3 scalar
            ],
            out_specs=pl.BlockSpec((1, tile_b), lambda i: (0, i)),    # lane-dense
        ),
        compiler_params=pltpu.CompilerParams(
            dimension_semantics=("parallel",),   # batch axis: megacore-shardable
            # One bool per operand: only x has a non-trivial producer worth
            # fusing into the kernel's input buffer.
            allow_input_fusion=[True, False, False, False, False, False],
        ),
    )(x_aug, w1a, w2, b2, w3p, b3)

    if Bp != B:
        out = out[:, :B]
    return out.reshape(B, 1)


def init_params(key):
    """Deterministic synthetic init matching nn.Linear (weights stored (out, in))."""
    ks = jax.random.split(key, 6)

    def lin(kw, kb, fan_in, fan_out):
        bound = 1.0 / jnp.sqrt(fan_in)
        w = jax.random.uniform(kw, (fan_out, fan_in), jnp.float32, -bound, bound)
        b = jax.random.uniform(kb, (fan_out, 1), jnp.float32, -bound, bound)
        return w, b

    w1, b1 = lin(ks[0], ks[1], 3, 64)
    w2, b2 = lin(ks[2], ks[3], 64, 64)
    w3, b3 = lin(ks[4], ks[5], 64, 1)
    # w3 kept as a (1, 64) row; b3 as a (1,) SMEM scalar.
    return (w1, b1, w2, b2, w3, b3.reshape(1))


if __name__ == "__main__":
    key = jax.random.PRNGKey(0)
    kx, kp = jax.random.split(key)
    params = init_params(kp)
    w1, b1, w2, b2, w3, b3 = params

    def reference(x):
        # Full-precision pure-JAX reference of the same math.
        with jax.default_matmul_precision("highest"):
            h = jnp.maximum(x @ w1.T + b1.T, 0.0)
            h = jnp.maximum(h @ w2.T + b2.T, 0.0)
            return h @ w3.T + b3[None, :]

    # tiny batch / ragged single-tile / multi-step even grid / exact-tile fast path
    cases = ((8, None), (300, None), (2500, 1024), (4096, None))
    for B, tb in cases:
        x = jax.random.normal(jax.random.fold_in(kx, B), (B, 3), jnp.float32)
        if tb is None:
            y = forward_net(x, params)
        else:
            y = forward_net(x, params, tile_b=tb)
        jax.block_until_ready(y)
        ref = reference(x)
        assert y.shape == (B, 1)
        err = float(jnp.max(jnp.abs(y - ref)))
        assert jnp.allclose(y, ref, atol=1e-4, rtol=1e-4), (
            f"mismatch at B={B}: max abs err {err}")

    print("KERNEL_OK")
</pallas_src>

<mosaic_0001>
module attributes {stable_mosaic.version = 11 : i64} {
  func.func @_mlp_kernel(%arg0: i32, %arg1: memref<8x128xf32, #tpu.memory_space<vmem>>, %arg2: memref<64x8xf32, #tpu.memory_space<vmem>>, %arg3: memref<64x64xf32, #tpu.memory_space<vmem>>, %arg4: memref<64x1xf32, #tpu.memory_space<vmem>>, %arg5: memref<8x64xf32, #tpu.memory_space<vmem>>, %arg6: memref<1xf32, #tpu.memory_space<smem>>, %arg7: memref<1x128xf32, #tpu.memory_space<vmem>>) attributes {dimension_semantics = [#tpu.dimension_semantics<parallel>], iteration_bounds = array<i64: 1>, scalar_prefetch = 0 : i64, scratch_operands = 0 : i64, tpu.core_type = #tpu.core_type<tc>, window_params = [{transform_indices = @transform_0, window_bounds = array<i64: 8, 128>}, {pipeline_mode = #tpu.pipeline_mode<synchronous>, transform_indices = @transform_1, window_bounds = array<i64: 64, 8>}, {pipeline_mode = #tpu.pipeline_mode<synchronous>, transform_indices = @transform_2, window_bounds = array<i64: 64, 64>}, {pipeline_mode = #tpu.pipeline_mode<synchronous>, transform_indices = @transform_3, window_bounds = array<i64: 64, 1>}, {pipeline_mode = #tpu.pipeline_mode<synchronous>, transform_indices = @transform_4, window_bounds = array<i64: 8, 64>}, {transform_indices = @transform_5, window_bounds = array<i64: 1>}, {transform_indices = @transform_6, window_bounds = array<i64: 1, 128>}]} {
    %c0 = arith.constant 0 : index
    %c0_0 = arith.constant 0 : index
    %0 = vector.load %arg2[%c0, %c0_0] : memref<64x8xf32, #tpu.memory_space<vmem>>, vector<64x8xf32>
    %c0_1 = arith.constant 0 : index
    %c0_2 = arith.constant 0 : index
    %1 = vector.load %arg3[%c0_1, %c0_2] : memref<64x64xf32, #tpu.memory_space<vmem>>, vector<64x64xf32>
    %c0_3 = arith.constant 0 : index
    %c0_4 = arith.constant 0 : index
    %2 = vector.load %arg5[%c0_3, %c0_4] : memref<8x64xf32, #tpu.memory_space<vmem>>, vector<8x64xf32>
    %c0_5 = arith.constant 0 : index
    %c0_6 = arith.constant 0 : index
    %3 = vector.load %arg4[%c0_5, %c0_6] : memref<64x1xf32, #tpu.memory_space<vmem>>, vector<64x1xf32>
    %4 = vector.shape_cast %3 : vector<64x1xf32> to vector<64x1xf32>
    %5 = vector.broadcast %4 : vector<64x1xf32> to vector<64x128xf32>
    %c0_7 = arith.constant 0 : index
    %6 = memref.load %arg6[%c0_7] : memref<1xf32, #tpu.memory_space<smem>>
    %c0_8 = arith.constant 0 : index
    %c0_9 = arith.constant 0 : index
    %7 = vector.load %arg1[%c0_8, %c0_9] : memref<8x128xf32, #tpu.memory_space<vmem>>, vector<8x128xf32>
    %cst = arith.constant dense<0.000000e+00> : vector<64x128xf32>
    %8 = tpu.matmul %0, %7, %cst {dimension_numbers = #tpu.dot_dimension_numbers<[1], [0], [0], [1], [0, 0, 1, 1], [], []>} : vector<64x8xf32>, vector<8x128xf32>, vector<64x128xf32> -> vector<64x128xf32>
    %cst_10 = arith.constant 0.000000e+00 : f32
    %9 = vector.broadcast %cst_10 : f32 to vector<64x128xf32>
    %10 = arith.maximumf %8, %9 : vector<64x128xf32>
    %cst_11 = arith.constant dense<0.000000e+00> : vector<64x128xf32>
    %11 = tpu.matmul %1, %10, %cst_11 {dimension_numbers = #tpu.dot_dimension_numbers<[1], [0], [0], [1], [0, 0, 1, 1], [], []>} : vector<64x64xf32>, vector<64x128xf32>, vector<64x128xf32> -> vector<64x128xf32>
    %12 = arith.addf %11, %5 : vector<64x128xf32>
    %cst_12 = arith.constant 0.000000e+00 : f32
    %13 = vector.broadcast %cst_12 : f32 to vector<64x128xf32>
    %14 = arith.maximumf %12, %13 : vector<64x128xf32>
    %cst_13 = arith.constant dense<0.000000e+00> : vector<8x128xf32>
    %15 = tpu.matmul %2, %14, %cst_13 {dimension_numbers = #tpu.dot_dimension_numbers<[1], [0], [0], [1], [0, 0, 1, 1], [], []>} : vector<8x64xf32>, vector<64x128xf32>, vector<8x128xf32> -> vector<8x128xf32>
    %16 = vector.extract_strided_slice %15 {offsets = [0, 0], sizes = [1, 128], strides = [1, 1]} : vector<8x128xf32> to vector<1x128xf32>
    %17 = vector.broadcast %6 : f32 to vector<1x128xf32>
    %18 = arith.addf %16, %17 : vector<1x128xf32>
    %c0_14 = arith.constant 0 : index
    %c0_15 = arith.constant 0 : index
    %19 = vector.load %arg7[%c0_14, %c0_15] : memref<1x128xf32, #tpu.memory_space<vmem>>, vector<1x128xf32>
    tpu.vector_store %arg7[%c0_14, %c0_15], %18 {strides = array<i32>} : memref<1x128xf32, #tpu.memory_space<vmem>>, vector<1x128xf32>,
    return
  }
  func.func @transform_0(%arg0: i32) -> (i32, i32) {
    %c0_i32 = arith.constant 0 : i32
    %c0_i32_0 = arith.constant 0 : i32
    return %c0_i32, %arg0 : i32, i32
  }
  func.func @transform_1(%arg0: i32) -> (i32, i32) {
    %c0_i32 = arith.constant 0 : i32
    %c0_i32_0 = arith.constant 0 : i32
    %c0_i32_1 = arith.constant 0 : i32
    return %c0_i32, %c0_i32_0 : i32, i32
  }
  func.func @transform_2(%arg0: i32) -> (i32, i32) {
    %c0_i32 = arith.constant 0 : i32
    %c0_i32_0 = arith.constant 0 : i32
    %c0_i32_1 = arith.constant 0 : i32
    return %c0_i32, %c0_i32_0 : i32, i32
  }
  func.func @transform_3(%arg0: i32) -> (i32, i32) {
    %c0_i32 = arith.constant 0 : i32
    %c0_i32_0 = arith.constant 0 : i32
    %c0_i32_1 = arith.constant 0 : i32
    return %c0_i32, %c0_i32_0 : i32, i32
  }
  func.func @transform_4(%arg0: i32) -> (i32, i32) {
    %c0_i32 = arith.constant 0 : i32
    %c0_i32_0 = arith.constant 0 : i32
    %c0_i32_1 = arith.constant 0 : i32
    return %c0_i32, %c0_i32_0 : i32, i32
  }
  func.func @transform_5(%arg0: i32) -> i32 {
    %c0_i32 = arith.constant 0 : i32
    %c0_i32_0 = arith.constant 0 : i32
    return %c0_i32 : i32
  }
  func.func @transform_6(%arg0: i32) -> (i32, i32) {
    %c0_i32 = arith.constant 0 : i32
    %c0_i32_0 = arith.constant 0 : i32
    return %c0_i32, %arg0 : i32, i32
  }
}

</mosaic_0001>

<llo_original>
// kernel: forward_net.2
$region0: #{forward_net.2}
  #allocation0 [shape = 'u32[]', space=smem, size = 0x4, offset = 0x4, fixed_abs, tag = 'smem constant byte address 0x4 - core index']
  #allocation1 [shape = 'u32[72,128]{1,0:T(1,128)}', space=vmem, size = 0x9000, scoped, tag = 'internal scratch']
  #allocation2 [shape = 'u32[2048]{0}', space=vmem, size = 0x2000, scoped, tag = 'scoped memory for forward_net.2']
  #allocation3 [shape = 'u32[2048]{0}', space=vmem, size = 0x2000, scoped, tag = 'scoped memory for forward_net.2']
  #allocation4 [shape = 'u32[2048]{0}', space=vmem, size = 0x2000, scoped, tag = 'scoped memory for forward_net.2']
  #allocation5 [shape = 'u32[2048]{0}', space=vmem, size = 0x2000, scoped, tag = 'scoped memory for forward_net.2']
  #allocation6 [shape = 'u32[2048]{0}', space=vmem, size = 0x2000, scoped, tag = 'scoped memory for forward_net.2']
  #allocation7 [shape = 'f32[1]{0:T(128)S(6)}', space=smem, size = 0x200, scoped, tag = 'scoped memory for forward_net.2']
  %s0 = inlined_call_operand.vmem [shape: f32[64,8], index: 0, kind: input, shape index: {}]
  %s1 = inlined_call_operand.vmem [shape: f32[64,64], index: 1, kind: input, shape index: {}]
  %s2 = inlined_call_operand.vmem [shape: f32[64,1], index: 2, kind: input, shape index: {}]
  %s3 = inlined_call_operand.vmem [shape: f32[8,64], index: 3, kind: input, shape index: {}]
  %s4 = inlined_call_operand.<no memory space> [shape: f32[1], index: 4, kind: input, shape index: {}]
  %s5 = inlined_call_operand.vmem [shape: f32[3,8], index: 5, kind: input, shape index: {}]
  %s6 = inlined_call_operand.<no memory space> [shape: f32[], index: 6, kind: input, shape index: {}]
  %s7 = inlined_call_operand.<no memory space> [shape: f32[], index: 7, kind: input, shape index: {}]
  %s8 = inlined_call_operand.<no memory space> [shape: s32[], index: 8, kind: input, shape index: {}]
  %s9 = inlined_call_operand.vmem [shape: f32[8], index: 9, kind: input, shape index: {}]
  %s10 = inlined_call_operand.vmem [shape: f32[8], index: 10, kind: input, shape index: {}]
  %s11 = inlined_call_operand.vmem [shape: f32[1,128], index: 11, kind: output, shape index: {}]
  %s12 = sld [smem:[#allocation0]]
  $region42: #{forward_net.2} parent=0
    _
  %s14 = ssub.s32 1, %s12
  %s15 = scalar_select 0, %s14, %s12
  %v16 = vstv %s6
  %v17 = vstv %s7
  %v18 = vstv %s8
  %19 = sst [smem:[#allocation7]] %s4
  $region1: #{forward_net.2} parent=0
    #allocation8 [shape = 'u8[4096]{0}', space=vmem, size = 0x1000, dematerialized = true, scoped, tag = 'FusionAdapter Buffer %fusion.2 = f32[8,128]{1,0:T(8,128)} fusion(%param_5.9, %param_6.3, %param_7.4, %param_8.5, %param_9.6, %param_10.5), kind=kLoop, calls=%fused_computation.1.clone.clone, metadata={op_name="jit(forward_net)/concatenate" stack_frame_id=11}']
    // Predicated region
    $region2: #{forward_net.2} parent=1 // pred_check
      _
    $region3: #{forward_net.2} parent=1 // pred_check_branch
      %21 = sbr.rel (0) target = $region5
    $region4: #{forward_net.2} parent=1 // pred_region
      _
    $region5: #{forward_net.2} parent=1 // pred_fallthru
      _
    // Predicated region
    $region6: #{forward_net.2} parent=1 // pred_check
      _
    $region7: #{forward_net.2} parent=1 // pred_check_branch
      %23 = sbr.rel (0) target = $region9
    $region8: #{forward_net.2} parent=1 // pred_region
      _
    $region9: #{forward_net.2} parent=1 // pred_fallthru
      _
    // Predicated region
    $region10: #{forward_net.2} parent=1 // pred_check
      _
    $region11: #{forward_net.2} parent=1 // pred_check_branch
      %25 = sbr.rel (0) target = $region13
    $region12: #{forward_net.2} parent=1 // pred_region
      _
    $region13: #{forward_net.2} parent=1 // pred_fallthru
      _
    // Predicated region
    $region14: #{forward_net.2} parent=1 // pred_check
      _
    $region15: #{forward_net.2} parent=1 // pred_check_branch
      %27 = sbr.rel (0) target = $region17
    $region16: #{forward_net.2} parent=1 // pred_region
      _
    $region17: #{forward_net.2} parent=1 // pred_fallthru
      _
    // Predicated region
    $region18: #{forward_net.2} parent=1 // pred_check
      _
    $region19: #{forward_net.2} parent=1 // pred_check_branch
      %29 = sbr.rel (0) target = $region21
    $region20: #{forward_net.2} parent=1 // pred_region
      _
    $region21: #{forward_net.2} parent=1 // pred_fallthru
      _
    // Predicated region
    $region22: #{forward_net.2} parent=1 // pred_check
      _
    $region23: #{forward_net.2} parent=1 // pred_check_branch
      %31 = sbr.rel (0) target = $region25
    $region24: #{forward_net.2} parent=1 // pred_region
      _
    $region25: #{forward_net.2} parent=1 // pred_fallthru
      _
    // Predicated region
    $region26: #{forward_net.2} parent=1 // pred_check
      _
    $region27: #{forward_net.2} parent=1 // pred_check_branch
      %33 = sbr.rel (0) target = $region29
    $region28: #{forward_net.2} parent=1 // pred_region
      _
    $region29: #{forward_net.2} parent=1 // pred_fallthru
      _
    // Predicated region
    $region30: #{forward_net.2} parent=1 // pred_check
      _
    $region31: #{forward_net.2} parent=1 // pred_check_branch
      %35 = sbr.rel (0) target = $region33
    $region32: #{forward_net.2} parent=1 // pred_region
      _
    $region33: #{forward_net.2} parent=1 // pred_fallthru
      _
    %v36 = vld [vmem:[%s5] sm:$0x7]
    %v37 = vlaneseq
    %v38 = vshrl.u32 %v37, 7
    %vm40 = vcmp.lt.s32.totalorder %v38, 3
    %v41 = vsel %vm40, %v36, %v16
    %v42 = vlaneseq
    %v43 = vand.u32 %v42, 127
    %vm45 = vcmp.lt.s32.totalorder %v43, 8
    %v46 = vsel %vm45, %v41, %v16
    %v47 = vld [vmem:[%s9] ss:$0 sm:$0xff]
    %v48 = vlaneseq
    %v49 = vshrl.u32 %v48, 7
    %51 = vset.pattern.permute.xlu0 %v49
    %52 = vperm.xlu0 %51, %v47
    %v53 = vpop.permute.xlu0 %52
    %v54 = vld [vmem:[%s10] ss:$0 sm:$0xff]
    %v55 = vlaneseq
    %v56 = vshrl.u32 %v55, 7
    %58 = vset.pattern.permute.xlu0 %v56
    %59 = vperm.xlu0 %58, %v54
    %v60 = vpop.permute.xlu0 %59
    %v61 = vlaneseq
    %v62 = vshrl.u32 %v61, 7
    %65 = xla_tuple %v62, %v18
    %66 = xla_tuple %65
    %vm67 = vcmp.lt.s32.totalorder %v62, %v18
    %v68 = vsel %vm67, 1, 0
    %69 = xla_tuple %v68
    %70 = xla_tuple %v68, %v46, %v17
    %71 = xla_tuple %70
    %v72 = vsel %vm67, %v46, %v17
    %73 = xla_tuple %v72
    %74 = xla_tuple %v72, %v60
    %75 = xla_tuple %74
    %v76 = vmax.f32 %v72, %v60
    %77 = xla_tuple %v76
    %78 = xla_tuple %v76, %v53
    %79 = xla_tuple %78
    %v80 = vmax.f32 %v76, %v53
    %81 = xla_tuple %v80
    %s83 = ssub.s32 256, 1
    %84 = vst [vmem:[#allocation8] sm:%s83] %v80
    %v85 = vld [vmem:[%s0] sm:$0xff]
    %v86 = vld [vmem:[%s0 + $0x8] sm:$0xff]
    %v87 = vld [vmem:[%s0 + $0x10] sm:$0xff]
    %v88 = vld [vmem:[%s0 + $0x18] sm:$0xff]
    %v89 = vld [vmem:[%s0 + $0x20] sm:$0xff]
    %v90 = vld [vmem:[%s0 + $0x28] sm:$0xff]
    %v91 = vld [vmem:[%s0 + $0x30] sm:$0xff]
    %v92 = vld [vmem:[%s0 + $0x38] sm:$0xff]
    %v93 = vld [vmem:[%s1] sm:$0xff]
    %v94 = vld [vmem:[%s1 + $0x8] sm:$0xff]
    %v95 = vld [vmem:[%s1 + $0x10] sm:$0xff]
    %v96 = vld [vmem:[%s1 + $0x18] sm:$0xff]
    %v97 = vld [vmem:[%s1 + $0x20] sm:$0xff]
    %v98 = vld [vmem:[%s1 + $0x28] sm:$0xff]
    %v99 = vld [vmem:[%s1 + $0x30] sm:$0xff]
    %v100 = vld [vmem:[%s1 + $0x38] sm:$0xff]
    %v101 = vld [vmem:[%s3] sm:$0xff]
    %v102 = vld [vmem:[%s2] sm:$0xff]
    %v103 = vld [vmem:[%s2 + $0x8] sm:$0xff]
    %v104 = vld [vmem:[%s2 + $0x10] sm:$0xff]
    %v105 = vld [vmem:[%s2 + $0x18] sm:$0xff]
    %v106 = vld [vmem:[%s2 + $0x20] sm:$0xff]
    %v107 = vld [vmem:[%s2 + $0x28] sm:$0xff]
    %v108 = vld [vmem:[%s2 + $0x30] sm:$0xff]
    %v109 = vld [vmem:[%s2 + $0x38] sm:$0xff]
    %111 = vset.pattern.permute.xlu0 0
    %112 = vperm.xlu0 %111, %v102
    %v113 = vpop.permute.xlu0 %112
    %116 = vset.pattern.permute.xlu0 0
    %117 = vperm.xlu0 %116, %v103
    %v118 = vpop.permute.xlu0 %117
    %121 = vset.pattern.permute.xlu0 0
    %122 = vperm.xlu0 %121, %v104
    %v123 = vpop.permute.xlu0 %122
    %126 = vset.pattern.permute.xlu0 0
    %127 = vperm.xlu0 %126, %v105
    %v128 = vpop.permute.xlu0 %127
    %131 = vset.pattern.permute.xlu0 0
    %132 = vperm.xlu0 %131, %v106
    %v133 = vpop.permute.xlu0 %132
    %136 = vset.pattern.permute.xlu0 0
    %137 = vperm.xlu0 %136, %v107
    %v138 = vpop.permute.xlu0 %137
    %141 = vset.pattern.permute.xlu0 0
    %142 = vperm.xlu0 %141, %v108
    %v143 = vpop.permute.xlu0 %142
    %146 = vset.pattern.permute.xlu0 0
    %147 = vperm.xlu0 %146, %v109
    %v148 = vpop.permute.xlu0 %147
    %s150 = sld [smem:[#allocation7]]
    %v151 = vld [vmem:[#allocation8] sm:$0xff]
    %vm152 = vcmask 64512
    %v154 = vsel %vm152, %v85, 0
    %v157 = vsel %vm152, %v86, 0
    %v160 = vsel %vm152, %v87, 0
    %v163 = vsel %vm152, %v88, 0
    %v166 = vsel %vm152, %v89, 0
    %v169 = vsel %vm152, %v90, 0
    %v172 = vsel %vm152, %v91, 0
    %v175 = vsel %vm152, %v92, 0
    %177 = vmatpush.msra.mxu0 0.0
    %178 = vmatpush.msra.mxu0 0.0
    %179 = vmatpush.msra.mxu0 0.0
    %180 = vmatpush.msra.mxu0 0.0
    %181 = vmatpush.msra.mxu0 0.0
    %182 = vmatpush.msra.mxu0 0.0
    %183 = vmatpush.msra.mxu0 0.0
    %184 = vmatpush.msra.mxu0 0.0
    %185 = vmatpush.msra.mxu0 0.0
    %186 = vmatpush.msra.mxu0 0.0
    %187 = vmatpush.msra.mxu0 0.0
    %188 = vmatpush.msra.mxu0 0.0
    %189 = vmatpush.msra.mxu0 0.0
    %190 = vmatpush.msra.mxu0 0.0
    %191 = vmatpush.msra.mxu0 0.0
    %192 = vmatpush.msra.mxu0 %v151
    %193 = vmatmul.f32.gmra.mxu0 %v154
    %v194 = vpop.f32.mrf.mxu0
    %v195 = vadd.f32 0.0, %v194
    %196 = vmatmul.f32.gmra.mxu0 %v157
    %v197 = vpop.f32.mrf.mxu0
    %v198 = vadd.f32 0.0, %v197
    %199 = vmatmul.f32.gmra.mxu0 %v160
    %v200 = vpop.f32.mrf.mxu0
    %v201 = vadd.f32 0.0, %v200
    %202 = vmatmul.f32.gmra.mxu0 %v163
    %v203 = vpop.f32.mrf.mxu0
    %v204 = vadd.f32 0.0, %v203
    %205 = vmatmul.f32.gmra.mxu0 %v166
    %v206 = vpop.f32.mrf.mxu0
    %v207 = vadd.f32 0.0, %v206
    %208 = vmatmul.f32.gmra.mxu0 %v169
    %v209 = vpop.f32.mrf.mxu0
    %v210 = vadd.f32 0.0, %v209
    %211 = vmatmul.f32.gmra.mxu0 %v172
    %v212 = vpop.f32.mrf.mxu0
    %v213 = vadd.f32 0.0, %v212
    %214 = vmatmul.f32.gmra.mxu0 %v175
    %v215 = vpop.f32.mrf.mxu0
    %v216 = vadd.f32 0.0, %v215
    %217 = vdwg.mxu0
    %v218 = vmax.f32 %v195, 0.0
    %v219 = vmax.f32 %v198, 0.0
    %v220 = vmax.f32 %v201, 0.0
    %v221 = vmax.f32 %v204, 0.0
    %v222 = vmax.f32 %v207, 0.0
    %v223 = vmax.f32 %v210, 0.0
    %v224 = vmax.f32 %v213, 0.0
    %v225 = vmax.f32 %v216, 0.0
    %vm226 = vcmask 523264
    %v228 = vsel %vm226, %v93, 0
    %v231 = vsel %vm226, %v94, 0
    %v234 = vsel %vm226, %v95, 0
    %v237 = vsel %vm226, %v96, 0
    %v240 = vsel %vm226, %v97, 0
    %v243 = vsel %vm226, %v98, 0
    %v246 = vsel %vm226, %v99, 0
    %v249 = vsel %vm226, %v100, 0
    %251 = vmatpush.msra.mxu0 0.0
    %252 = vmatpush.msra.mxu0 0.0
    %253 = vmatpush.msra.mxu0 0.0
    %254 = vmatpush.msra.mxu0 0.0
    %255 = vmatpush.msra.mxu0 0.0
    %256 = vmatpush.msra.mxu0 0.0
    %257 = vmatpush.msra.mxu0 0.0
    %258 = vmatpush.msra.mxu0 0.0
    %259 = vmatpush.msra.mxu0 %v225
    %260 = vmatpush.msra.mxu0 %v224
    %261 = vmatpush.msra.mxu0 %v223
    %262 = vmatpush.msra.mxu0 %v222
    %263 = vmatpush.msra.mxu0 %v221
    %264 = vmatpush.msra.mxu0 %v220
    %265 = vmatpush.msra.mxu0 %v219
    %266 = vmatpush.msra.mxu0 %v218
    %267 = vmatmul.f32.gmra.mxu0 %v228
    %v268 = vpop.f32.mrf.mxu0
    %v269 = vadd.f32 %v113, %v268
    %270 = vmatmul.f32.gmra.mxu0 %v231
    %v271 = vpop.f32.mrf.mxu0
    %v272 = vadd.f32 %v118, %v271
    %273 = vmatmul.f32.gmra.mxu0 %v234
    %v274 = vpop.f32.mrf.mxu0
    %v275 = vadd.f32 %v123, %v274
    %276 = vmatmul.f32.gmra.mxu0 %v237
    %v277 = vpop.f32.mrf.mxu0
    %v278 = vadd.f32 %v128, %v277
    %279 = vmatmul.f32.gmra.mxu0 %v240
    %v280 = vpop.f32.mrf.mxu0
    %v281 = vadd.f32 %v133, %v280
    %282 = vmatmul.f32.gmra.mxu0 %v243
    %v283 = vpop.f32.mrf.mxu0
    %v284 = vadd.f32 %v138, %v283
    %285 = vmatmul.f32.gmra.mxu0 %v246
    %v286 = vpop.f32.mrf.mxu0
    %v287 = vadd.f32 %v143, %v286
    %288 = vmatmul.f32.gmra.mxu0 %v249
    %v289 = vpop.f32.mrf.mxu0
    %v290 = vadd.f32 %v148, %v289
    %291 = vdwg.mxu0
    %v292 = vmax.f32 %v269, 0.0
    %v293 = vmax.f32 %v272, 0.0
    %v294 = vmax.f32 %v275, 0.0
    %v295 = vmax.f32 %v278, 0.0
    %v296 = vmax.f32 %v281, 0.0
    %v297 = vmax.f32 %v284, 0.0
    %v298 = vmax.f32 %v287, 0.0
    %v299 = vmax.f32 %v290, 0.0
    %v301 = vsel %vm226, %v101, 0
    %303 = vmatpush.msra.mxu0 0.0
    %304 = vmatpush.msra.mxu0 0.0
    %305 = vmatpush.msra.mxu0 0.0
    %306 = vmatpush.msra.mxu0 0.0
    %307 = vmatpush.msra.mxu0 0.0
    %308 = vmatpush.msra.mxu0 0.0
    %309 = vmatpush.msra.mxu0 0.0
    %310 = vmatpush.msra.mxu0 0.0
    %311 = vmatpush.msra.mxu0 %v299
    %312 = vmatpush.msra.mxu0 %v298
    %313 = vmatpush.msra.mxu0 %v297
    %314 = vmatpush.msra.mxu0 %v296
    %315 = vmatpush.msra.mxu0 %v295
    %316 = vmatpush.msra.mxu0 %v294
    %317 = vmatpush.msra.mxu0 %v293
    %318 = vmatpush.msra.mxu0 %v292
    %319 = vmatmul.f32.gmra.mxu0 %v301
    %v320 = vpop.f32.mrf.mxu0
    %v321 = vadd.f32 0.0, %v320
    %322 = vdwg.mxu0
    %v323 = vstv %s150
    %v324 = vadd.f32 %v321, %v323
    %325 = vst [vmem:[%s11] sm:$0x1] %v324
    // Predicated region
    $region34: #{forward_net.2} parent=1 // pred_check
      _
    $region35: #{forward_net.2} parent=1 // pred_check_branch
      %327 = sbr.rel (0) target = $region37
    $region36: #{forward_net.2} parent=1 // pred_region
      _
    $region37: #{forward_net.2} parent=1 // pred_fallthru
      _
    // Predicated region
    $region38: #{forward_net.2} parent=1 // pred_check
      _
    $region39: #{forward_net.2} parent=1 // pred_check_branch
      %329 = sbr.rel (0) target = $region41
    $region40: #{forward_net.2} parent=1 // pred_region
      _
    $region41: #{forward_net.2} parent=1 // pred_fallthru
      _

</llo_original>
